<compile_context>
chip_gen: v5e
topology: v5e:2x2
jax: 0.10.0
libtpu: 0.0.40
codegen_flags: <defaults>
</compile_context>

<pallas_src>
import functools

import jax
import jax.numpy as jnp
from jax import lax
from jax.experimental import pallas as pl
from jax.experimental.pallas import tpu as pltpu


# ----------------------------- hyper-params --------------------------------
FILTER_SIZES = (2, 3, 4)
NUM_FILTERS = 8
EMBED_DIM = 32
SEQ_LEN = 16
BATCH = 2
OUTPUT_SIZE = 4


# --------------------------------- kernel ----------------------------------
def _kernel(x_ref, w_ref, b_ref, fcw_ref, fcb_ref, out_ref, *,
            filter_sizes, num_filters, seq_len, l_win, max_fs, embed_dim):
    n_branches = len(filter_sizes)
    n_feat = n_branches * num_filters

    x = x_ref[...]                                   # (B, S_pad, E) f32
    bsz = x.shape[0]

    # ---- im2col: (B, L_win, max_fs*E), lane-dense K = max_fs*E = 128 ----
    cols = [x[:, dt:dt + l_win, :] for dt in range(max_fs)]
    xw = jnp.concatenate(cols, axis=-1)              # (B, L_win, max_fs*E)
    xw2 = xw.reshape(bsz * l_win, max_fs * embed_dim)

    # ---- single fused conv matmul on the MXU ----
    scores = jnp.dot(xw2, w_ref[...],
                     preferred_element_type=jnp.float32)   # (B*L_win, n_feat)
    scores = scores.reshape(bsz, l_win, n_feat)

    # ---- mask window positions invalid for each filter size (pre-pool) ----
    row = lax.broadcasted_iota(jnp.int32, (l_win, n_feat), 0)
    col = lax.broadcasted_iota(jnp.int32, (l_win, n_feat), 1)
    valid = jnp.full((l_win, n_feat), seq_len - filter_sizes[-1] + 1, jnp.int32)
    for j in range(n_branches - 2, -1, -1):
        valid = jnp.where(col < (j + 1) * num_filters,
                          seq_len - filter_sizes[j] + 1, valid)
    mask = row < valid                               # (L_win, n_feat) bool
    scores = jnp.where(mask[None, :, :], scores, jnp.float32(-1e30))

    # ---- max-pool over window positions, then bias + ReLU (hoisted) ----
    pooled = jnp.max(scores, axis=1)                 # (B, n_feat)
    pooled = jnp.maximum(pooled + b_ref[...], 0.0)   # (B, n_feat)

    # ---- final FC on the VPU: fcw is (out, feat), lane-reduce over feat ----
    prod = pooled[:, None, :] * fcw_ref[...][None, :, :]    # (B, out, feat)
    out = jnp.sum(prod, axis=-1) + fcb_ref[...]             # (B, out)
    out_ref[...] = out.astype(out_ref.dtype)


# --------------------------------- wrapper ----------------------------------
@functools.partial(jax.jit, static_argnames=("filter_sizes", "num_filters"))
def cnn_model_forward(x, conv_ws, conv_bs, fc_w, fc_b, *, filter_sizes, num_filters):
    """x: (B, S, E) float32.  conv_ws[i]: (nf, fs_i, E), conv_bs[i]: (nf,),
    fc_w: (out, n*nf), fc_b: (out,).  Returns logits (B, out)."""
    bsz, seq_len, embed_dim = x.shape
    out_size = fc_w.shape[0]
    max_fs = max(filter_sizes)
    min_fs = min(filter_sizes)

    # Round window count up to a sublane multiple; pad the sequence so every
    # window start has a full max_fs slab (zeros hit zero weights / the mask).
    l_valid = seq_len - min_fs + 1
    l_win = -(-l_valid // 8) * 8
    s_pad = l_win + max_fs - 1
    x_pad = jnp.pad(x, ((0, 0), (0, s_pad - seq_len), (0, 0)))

    # Fuse all conv weights into one (max_fs*E, n*nf) im2col weight (+ bias).
    w_cols = []
    for w in conv_ws:                                 # (nf, fs, E)
        fs = w.shape[1]
        w_p = jnp.pad(w, ((0, 0), (0, max_fs - fs), (0, 0)))       # (nf, max_fs, E)
        w_cols.append(jnp.transpose(w_p, (1, 2, 0))
                      .reshape(max_fs * embed_dim, num_filters))   # (max_fs*E, nf)
    w_fused = jnp.concatenate(w_cols, axis=1)         # (max_fs*E, n*nf)
    b_fused = jnp.concatenate([b.reshape(1, num_filters) for b in conv_bs],
                              axis=1)                 # (1, n*nf)
    fc_b2 = fc_b.reshape(1, out_size)                 # (1, out)

    kernel = functools.partial(
        _kernel, filter_sizes=filter_sizes, num_filters=num_filters,
        seq_len=seq_len, l_win=l_win, max_fs=max_fs, embed_dim=embed_dim)

    vmem = pl.BlockSpec(memory_space=pltpu.MemorySpace.VMEM)
    return pl.pallas_call(
        kernel,
        out_shape=jax.ShapeDtypeStruct((bsz, out_size), jnp.float32),
        in_specs=[vmem] * 5,
        out_specs=vmem,
    )(x_pad, w_fused, b_fused, fc_w, fc_b2)


# ------------------------- deterministic params ----------------------------
def init_params(key):
    """Mimics CNNModel.__init__ parameter shapes (PyTorch layouts, uniform init)."""
    keys = jax.random.split(key, 2 * len(FILTER_SIZES) + 2)
    conv_ws, conv_bs = [], []
    for i, fs in enumerate(FILTER_SIZES):
        fan_in = 1 * fs * EMBED_DIM
        bound = 1.0 / jnp.sqrt(fan_in)
        # PyTorch conv weight is (nf, 1, fs, E); channel dim squeezed -> (nf, fs, E).
        conv_ws.append(jax.random.uniform(
            keys[2 * i], (NUM_FILTERS, fs, EMBED_DIM),
            minval=-bound, maxval=bound, dtype=jnp.float32))
        conv_bs.append(jax.random.uniform(
            keys[2 * i + 1], (NUM_FILTERS,),
            minval=-bound, maxval=bound, dtype=jnp.float32))
    feat_dim = len(FILTER_SIZES) * NUM_FILTERS
    bound = 1.0 / jnp.sqrt(feat_dim)
    fc_w = jax.random.uniform(                        # PyTorch layout (out, feat)
        keys[-2], (OUTPUT_SIZE, feat_dim),
        minval=-bound, maxval=bound, dtype=jnp.float32)
    fc_b = jax.random.uniform(
        keys[-1], (OUTPUT_SIZE,),
        minval=-bound, maxval=bound, dtype=jnp.float32)
    return conv_ws, conv_bs, fc_w, fc_b


if __name__ == "__main__":
    root = jax.random.PRNGKey(0)
    k_x, k_p = jax.random.split(root)

    x = jax.random.normal(k_x, (BATCH, SEQ_LEN, EMBED_DIM), dtype=jnp.float32)
    conv_ws, conv_bs, fc_w, fc_b = init_params(k_p)

    logits = cnn_model_forward(
        x, tuple(conv_ws), tuple(conv_bs), fc_w, fc_b,
        filter_sizes=FILTER_SIZES, num_filters=NUM_FILTERS)
    jax.block_until_ready(logits)

    assert logits.shape == (BATCH, OUTPUT_SIZE), logits.shape
    assert logits.dtype == jnp.float32
    assert bool(jnp.all(jnp.isfinite(logits)))
    print("KERNEL_OK")
</pallas_src>

<mosaic_0001>
module attributes {stable_mosaic.version = 11 : i64} {
  func.func @_kernel(%arg0: memref<2x19x32xf32, #tpu.memory_space<vmem>>, %arg1: memref<128x24xf32, #tpu.memory_space<vmem>>, %arg2: memref<1x24xf32, #tpu.memory_space<vmem>>, %arg3: memref<4x24xf32, #tpu.memory_space<vmem>>, %arg4: memref<1x4xf32, #tpu.memory_space<vmem>>, %arg5: memref<2x4xf32, #tpu.memory_space<vmem>>) attributes {dimension_semantics = [], scalar_prefetch = 0 : i64, scratch_operands = 0 : i64, tpu.core_type = #tpu.core_type<tc>} {
    %c0 = arith.constant 0 : index
    %c0_0 = arith.constant 0 : index
    %c0_1 = arith.constant 0 : index
    %0 = vector.load %arg0[%c0, %c0_0, %c0_1] : memref<2x19x32xf32, #tpu.memory_space<vmem>>, vector<2x19x32xf32>
    %1 = vector.extract_strided_slice %0 {offsets = [0, 0, 0], sizes = [2, 16, 32], strides = [1, 1, 1]} : vector<2x19x32xf32> to vector<2x16x32xf32>
    %2 = vector.extract_strided_slice %0 {offsets = [0, 1, 0], sizes = [2, 16, 32], strides = [1, 1, 1]} : vector<2x19x32xf32> to vector<2x16x32xf32>
    %3 = vector.extract_strided_slice %0 {offsets = [0, 2, 0], sizes = [2, 16, 32], strides = [1, 1, 1]} : vector<2x19x32xf32> to vector<2x16x32xf32>
    %4 = vector.extract_strided_slice %0 {offsets = [0, 3, 0], sizes = [2, 16, 32], strides = [1, 1, 1]} : vector<2x19x32xf32> to vector<2x16x32xf32>
    %5 = tpu.concatenate %1, %2, %3, %4 in 2 : vector<2x16x32xf32>, vector<2x16x32xf32>, vector<2x16x32xf32>, vector<2x16x32xf32> -> vector<2x16x128xf32>
    %6 = vector.shape_cast %5 : vector<2x16x128xf32> to vector<32x128xf32>
    %c0_2 = arith.constant 0 : index
    %c0_3 = arith.constant 0 : index
    %7 = vector.load %arg1[%c0_2, %c0_3] : memref<128x24xf32, #tpu.memory_space<vmem>>, vector<128x24xf32>
    %cst = arith.constant dense<0.000000e+00> : vector<32x24xf32>
    %8 = tpu.matmul %6, %7, %cst {dimension_numbers = #tpu.dot_dimension_numbers<[1], [0], [0], [1], [0, 0, 1, 1], [], []>} : vector<32x128xf32>, vector<128x24xf32>, vector<32x24xf32> -> vector<32x24xf32>
    %9 = vector.shape_cast %8 : vector<32x24xf32> to vector<2x16x24xf32>
    %10 = tpu.iota {dimensions = array<i32: 0>} : vector<16x24xi32>
    %11 = tpu.iota {dimensions = array<i32: 1>} : vector<16x24xi32>
    %c13_i32 = arith.constant 13 : i32
    %12 = vector.broadcast %c13_i32 : i32 to vector<16x24xi32>
    %c16_i32 = arith.constant 16 : i32
    %13 = vector.broadcast %c16_i32 : i32 to vector<16x24xi32>
    %14 = arith.cmpi slt, %11, %13 : vector<16x24xi32>
    %c14_i32 = arith.constant 14 : i32
    %15 = vector.broadcast %c14_i32 : i32 to vector<16x24xi32>
    %16 = arith.select %14, %15, %12 : vector<16x24xi1>, vector<16x24xi32>
    %c8_i32 = arith.constant 8 : i32
    %17 = vector.broadcast %c8_i32 : i32 to vector<16x24xi32>
    %18 = arith.cmpi slt, %11, %17 : vector<16x24xi32>
    %c15_i32 = arith.constant 15 : i32
    %19 = vector.broadcast %c15_i32 : i32 to vector<16x24xi32>
    %20 = arith.select %18, %19, %16 : vector<16x24xi1>, vector<16x24xi32>
    %21 = arith.cmpi slt, %10, %20 : vector<16x24xi32>
    %22 = vector.shape_cast %21 : vector<16x24xi1> to vector<1x16x24xi1>
    %cst_4 = arith.constant -1.000000e+30 : f32
    %23 = vector.shape_cast %22 : vector<1x16x24xi1> to vector<1x16x24xi1>
    %24 = vector.broadcast %23 : vector<1x16x24xi1> to vector<2x16x24xi1>
    %25 = vector.broadcast %cst_4 : f32 to vector<2x16x24xf32>
    %26 = arith.select %24, %9, %25 : vector<2x16x24xi1>, vector<2x16x24xf32>
    %cst_5 = arith.constant dense<0xFF800000> : vector<2x24xf32>
    %27 = vector.multi_reduction <maximumf>, %26, %cst_5 [1] : vector<2x16x24xf32> to vector<2x24xf32>
    %c0_6 = arith.constant 0 : index
    %c0_7 = arith.constant 0 : index
    %28 = vector.load %arg2[%c0_6, %c0_7] : memref<1x24xf32, #tpu.memory_space<vmem>>, vector<1x24xf32>
    %29 = vector.broadcast %28 : vector<1x24xf32> to vector<2x24xf32>
    %30 = arith.addf %27, %29 : vector<2x24xf32>
    %cst_8 = arith.constant 0.000000e+00 : f32
    %31 = vector.broadcast %cst_8 : f32 to vector<2x24xf32>
    %32 = arith.maximumf %30, %31 : vector<2x24xf32>
    %33 = vector.shape_cast %32 : vector<2x24xf32> to vector<2x1x24xf32>
    %c0_9 = arith.constant 0 : index
    %c0_10 = arith.constant 0 : index
    %34 = vector.load %arg3[%c0_9, %c0_10] : memref<4x24xf32, #tpu.memory_space<vmem>>, vector<4x24xf32>
    %35 = vector.shape_cast %34 : vector<4x24xf32> to vector<1x4x24xf32>
    %36 = vector.broadcast %33 : vector<2x1x24xf32> to vector<2x4x24xf32>
    %37 = vector.broadcast %35 : vector<1x4x24xf32> to vector<2x4x24xf32>
    %38 = arith.mulf %36, %37 : vector<2x4x24xf32>
    %cst_11 = arith.constant dense<0.000000e+00> : vector<2x4xf32>
    %39 = vector.multi_reduction <add>, %38, %cst_11 [2] : vector<2x4x24xf32> to vector<2x4xf32>
    %c0_12 = arith.constant 0 : index
    %c0_13 = arith.constant 0 : index
    %40 = vector.load %arg4[%c0_12, %c0_13] : memref<1x4xf32, #tpu.memory_space<vmem>>, vector<1x4xf32>
    %41 = vector.broadcast %40 : vector<1x4xf32> to vector<2x4xf32>
    %42 = arith.addf %39, %41 : vector<2x4xf32>
    %c0_14 = arith.constant 0 : index
    %c0_15 = arith.constant 0 : index
    %43 = vector.load %arg5[%c0_14, %c0_15] : memref<2x4xf32, #tpu.memory_space<vmem>>, vector<2x4xf32>
    tpu.vector_store %arg5[%c0_14, %c0_15], %42 {strides = array<i32>} : memref<2x4xf32, #tpu.memory_space<vmem>>, vector<2x4xf32>,
    return
  }
}

</mosaic_0001>

<llo_original>
// kernel: cnn_model_forward.1
$region0: #{cnn_model_forward.1}
  #allocation0 [shape = 'u32[]', space=smem, size = 0x4, offset = 0x4, fixed_abs, tag = 'smem constant byte address 0x4 - core index']
  #allocation1 [shape = 'u32[72,128]{1,0:T(1,128)}', space=vmem, size = 0x9000, scoped, tag = 'internal scratch']
  %s0 = inlined_call_operand.vmem [shape: f32[2,19,32], index: 0, kind: input, shape index: {}]
  %s1 = inlined_call_operand.vmem [shape: f32[128,24], index: 1, kind: input, shape index: {}]
  %s2 = inlined_call_operand.vmem [shape: f32[1,24], index: 2, kind: input, shape index: {}]
  %s3 = inlined_call_operand.vmem [shape: f32[4,24], index: 3, kind: input, shape index: {}]
  %s4 = inlined_call_operand.vmem [shape: f32[1,4], index: 4, kind: input, shape index: {}]
  %s5 = inlined_call_operand.hbm [shape: f32[2,4], index: 5, kind: output, shape index: {}]
  %s6 = sld [smem:[#allocation0]]
  $region30: #{cnn_model_forward.1} parent=0
    _
  %s8 = ssub.s32 1, %s6
  %s9 = scalar_select 0, %s8, %s6
  $region1: #{cnn_model_forward.1} parent=0
    #allocation2 [shape = 'u8[1024]{0}', space=vmem, size = 0x400, scoped, tag = 'output window, operand 0, single buffered']
    #allocation3 [shape = 's32[1]{0}', space=sflag, size = 0x4, scoped, tag = 'scoped memory for cnn_model_forward.1']
    %10 = vsyncpa [#allocation3], 0
    // Predicated region
    $region2: #{cnn_model_forward.1} parent=1 // pred_check
      _
    $region3: #{cnn_model_forward.1} parent=1 // pred_check_branch
      %12 = sbr.rel (0) target = $region5
    $region4: #{cnn_model_forward.1} parent=1 // pred_region
      _
    $region5: #{cnn_model_forward.1} parent=1 // pred_fallthru
      _
    // Predicated region
    $region6: #{cnn_model_forward.1} parent=1 // pred_check
      _
    $region7: #{cnn_model_forward.1} parent=1 // pred_check_branch
      %14 = sbr.rel (0) target = $region9
    $region8: #{cnn_model_forward.1} parent=1 // pred_region
      _
    $region9: #{cnn_model_forward.1} parent=1 // pred_fallthru
      _
    // Predicated region
    $region10: #{cnn_model_forward.1} parent=1 // pred_check
      _
    $region11: #{cnn_model_forward.1} parent=1 // pred_check_branch
      %16 = sbr.rel (0) target = $region13
    $region12: #{cnn_model_forward.1} parent=1 // pred_region
      _
    $region13: #{cnn_model_forward.1} parent=1 // pred_fallthru
      _
    // Predicated region
    $region14: #{cnn_model_forward.1} parent=1 // pred_check
      _
    $region15: #{cnn_model_forward.1} parent=1 // pred_check_branch
      %18 = sbr.rel (0) target = $region17
    $region16: #{cnn_model_forward.1} parent=1 // pred_region
      _
    $region17: #{cnn_model_forward.1} parent=1 // pred_fallthru
      _
    // Predicated region
    $region18: #{cnn_model_forward.1} parent=1 // pred_check
      _
    $region19: #{cnn_model_forward.1} parent=1 // pred_check_branch
      %20 = sbr.rel (0) target = $region21
    $region20: #{cnn_model_forward.1} parent=1 // pred_region
      _
    $region21: #{cnn_model_forward.1} parent=1 // pred_fallthru
      _
    %v21 = vld [vmem:[%s0] sm:$0xff]
    %v22 = vld [vmem:[%s0 + $0x8] sm:$0xff]
    %v23 = vld [vmem:[%s0 + $0x10] sm:$0x7]
    %v24 = vld [vmem:[%s0 + $0x18] sm:$0xff]
    %v25 = vld [vmem:[%s0 + $0x20] sm:$0xff]
    %v26 = vld [vmem:[%s0 + $0x28] sm:$0x7]
    %vm33 = vcmask 1046528
    %v34 = vrot.slane %v21, 1
    %v35 = vrot.slane %v22, 1
    %v36 = vsel %vm33, %v34, %v35
    %v37 = vrot.slane %v23, 1
    %v38 = vsel %vm33, %v35, %v37
    %v39 = vrot.slane %v24, 1
    %v40 = vrot.slane %v25, 1
    %v41 = vsel %vm33, %v39, %v40
    %v42 = vrot.slane %v26, 1
    %v43 = vsel %vm33, %v40, %v42
    %44 = vrot.lane.b32.xlu0 %v36, 32
    %v45 = vpop.permute.xlu0 %44
    %46 = vrot.lane.b32.xlu0 %v38, 32
    %v47 = vpop.permute.xlu0 %46
    %48 = vrot.lane.b32.xlu0 %v41, 32
    %v49 = vpop.permute.xlu0 %48
    %50 = vrot.lane.b32.xlu0 %v43, 32
    %v51 = vpop.permute.xlu0 %50
    %vm56 = vcmask 1045504
    %v57 = vrot.slane %v21, 2
    %v58 = vrot.slane %v22, 2
    %v59 = vsel %vm56, %v57, %v58
    %v60 = vrot.slane %v23, 2
    %v61 = vsel %vm56, %v58, %v60
    %v62 = vrot.slane %v24, 2
    %v63 = vrot.slane %v25, 2
    %v64 = vsel %vm56, %v62, %v63
    %v65 = vrot.slane %v26, 2
    %v66 = vsel %vm56, %v63, %v65
    %67 = vrot.lane.b32.xlu0 %v59, 64
    %v68 = vpop.permute.xlu0 %67
    %69 = vrot.lane.b32.xlu0 %v61, 64
    %v70 = vpop.permute.xlu0 %69
    %71 = vrot.lane.b32.xlu0 %v64, 64
    %v72 = vpop.permute.xlu0 %71
    %73 = vrot.lane.b32.xlu0 %v66, 64
    %v74 = vpop.permute.xlu0 %73
    %vm79 = vcmask 1044480
    %v80 = vrot.slane %v21, 3
    %v81 = vrot.slane %v22, 3
    %v82 = vsel %vm79, %v80, %v81
    %v83 = vrot.slane %v23, 3
    %v84 = vsel %vm79, %v81, %v83
    %v85 = vrot.slane %v24, 3
    %v86 = vrot.slane %v25, 3
    %v87 = vsel %vm79, %v85, %v86
    %v88 = vrot.slane %v26, 3
    %v89 = vsel %vm79, %v86, %v88
    %90 = vrot.lane.b32.xlu0 %v82, 96
    %v91 = vpop.permute.xlu0 %90
    %92 = vrot.lane.b32.xlu0 %v84, 96
    %v93 = vpop.permute.xlu0 %92
    %94 = vrot.lane.b32.xlu0 %v87, 96
    %v95 = vpop.permute.xlu0 %94
    %96 = vrot.lane.b32.xlu0 %v89, 96
    %v97 = vpop.permute.xlu0 %96
    %vm102 = vcmask 261120
    %v103 = vsel %vm102, %v21, %v45
    %v104 = vsel %vm102, %v22, %v47
    %v105 = vsel %vm102, %v24, %v49
    %v106 = vsel %vm102, %v25, %v51
    %vm107 = vcmask 523264
    %v108 = vsel %vm107, %v103, %v68
    %v109 = vsel %vm107, %v104, %v70
    %v110 = vsel %vm107, %v105, %v72
    %v111 = vsel %vm107, %v106, %v74
    %vm112 = vcmask 785408
    %v113 = vsel %vm112, %v108, %v91
    %v114 = vsel %vm112, %v109, %v93
    %v115 = vsel %vm112, %v110, %v95
    %v116 = vsel %vm112, %v111, %v97
    %v117 = vld [vmem:[%s1] sm:$0xff]
    %v118 = vld [vmem:[%s1 + $0x8] sm:$0xff]
    %v119 = vld [vmem:[%s1 + $0x10] sm:$0xff]
    %v120 = vld [vmem:[%s1 + $0x18] sm:$0xff]
    %v121 = vld [vmem:[%s1 + $0x20] sm:$0xff]
    %v122 = vld [vmem:[%s1 + $0x28] sm:$0xff]
    %v123 = vld [vmem:[%s1 + $0x30] sm:$0xff]
    %v124 = vld [vmem:[%s1 + $0x38] sm:$0xff]
    %v125 = vld [vmem:[%s1 + $0x40] sm:$0xff]
    %v126 = vld [vmem:[%s1 + $0x48] sm:$0xff]
    %v127 = vld [vmem:[%s1 + $0x50] sm:$0xff]
    %v128 = vld [vmem:[%s1 + $0x58] sm:$0xff]
    %v129 = vld [vmem:[%s1 + $0x60] sm:$0xff]
    %v130 = vld [vmem:[%s1 + $0x68] sm:$0xff]
    %v131 = vld [vmem:[%s1 + $0x70] sm:$0xff]
    %v132 = vld [vmem:[%s1 + $0x78] sm:$0xff]
    %133 = vmatpush.msra.mxu0 %v132
    %134 = vmatpush.msra.mxu0 %v131
    %135 = vmatpush.msra.mxu0 %v130
    %136 = vmatpush.msra.mxu0 %v129
    %137 = vmatpush.msra.mxu0 %v128
    %138 = vmatpush.msra.mxu0 %v127
    %139 = vmatpush.msra.mxu0 %v126
    %140 = vmatpush.msra.mxu0 %v125
    %141 = vmatpush.msra.mxu0 %v124
    %142 = vmatpush.msra.mxu0 %v123
    %143 = vmatpush.msra.mxu0 %v122
    %144 = vmatpush.msra.mxu0 %v121
    %145 = vmatpush.msra.mxu0 %v120
    %146 = vmatpush.msra.mxu0 %v119
    %147 = vmatpush.msra.mxu0 %v118
    %148 = vmatpush.msra.mxu0 %v117
    %149 = vmatmul.f32.gmra.mxu0 %v113
    %v150 = vpop.f32.mrf.mxu0
    %v151 = vadd.f32 0.0, %v150
    %152 = vmatmul.f32.gmra.mxu0 %v114
    %v153 = vpop.f32.mrf.mxu0
    %v154 = vadd.f32 0.0, %v153
    %155 = vmatmul.f32.gmra.mxu0 %v115
    %v156 = vpop.f32.mrf.mxu0
    %v157 = vadd.f32 0.0, %v156
    %158 = vmatmul.f32.gmra.mxu0 %v116
    %v159 = vpop.f32.mrf.mxu0
    %v160 = vadd.f32 0.0, %v159
    %161 = vdwg.mxu0
    %v162 = vlaneseq
    %v163 = vshrl.u32 %v162, 7
    %v164 = vadd.s32 %v163, 8
    %v165 = vlaneseq
    %v166 = vand.u32 %v165, 127
    %vm167 = vcmp.lt.s32.totalorder %v166, 16
    %v168 = vsel %vm167, 14, 13
    %vm169 = vcmp.lt.s32.totalorder %v166, 8
    %v170 = vsel %vm169, 15, %v168
    %vm171 = vcmp.lt.s32.totalorder %v163, %v170
    %vm172 = vcmp.lt.s32.totalorder %v164, %v170
    %v173 = vsel %vm171, 1, 0
    %v174 = vsel %vm172, 1, 0
    %vm175 = vcmp.eq.s32.totalorder %v173, 1
    %vm176 = vcmp.eq.s32.totalorder %v174, 1
    %v177 = vsel %vm175, %v151, -1e+30
    %v178 = vsel %vm176, %v154, -1e+30
    %v179 = vsel %vm175, %v157, -1e+30
    %v180 = vsel %vm176, %v160, -1e+30
    %vm181 = vcmask 195584
    %v182 = vsel %vm181, %v177, -inf
    %v183 = vsel %vm181, %v178, -inf
    %v184 = vmax.f32 %v182, %v183
    %v185 = vrot.slane %v184, 4
    %v186 = vmax.f32 %v184, %v185
    %v187 = vrot.slane %v186, 2
    %v188 = vmax.f32 %v186, %v187
    %v189 = vrot.slane %v188, 1
    %v190 = vmax.f32 %v188, %v189
    %v191 = vsel %vm181, %v179, -inf
    %v192 = vsel %vm181, %v180, -inf
    %v193 = vmax.f32 %v191, %v192
    %v194 = vrot.slane %v193, 4
    %v195 = vmax.f32 %v193, %v194
    %v196 = vrot.slane %v195, 2
    %v197 = vmax.f32 %v195, %v196
    %v198 = vrot.slane %v197, 1
    %v199 = vmax.f32 %v197, %v198
    %v200 = vld [vmem:[%s2] sm:$0x1]
    %v202 = vperm.slane %v200, 0
    %v204 = vadd.f32 %v190, %v202
    %v205 = vadd.f32 %v199, %v202
    %v206 = vmax.f32 %v204, 0.0
    %v207 = vmax.f32 %v205, 0.0
    %v208 = vld [vmem:[%s3] sm:$0xf]
    %v209 = vperm.slane %v206, 0
    %v210 = vperm.slane %v207, 0
    %v211 = vmul.f32 %v209, %v208
    %v212 = vmul.f32 %v210, %v208
    %vm213 = vcmask 191488
    %v214 = vsel %vm213, %v211, 0.0
    %215 = vadd.xlane.f32.xlu0 %v214
    %v216 = vpop.xlane.xlu0 %215
    %v217 = vsel %vm213, %v212, 0.0
    %218 = vadd.xlane.f32.xlu0 %v217
    %v219 = vpop.xlane.xlu0 %218
    %v220 = vld [vmem:[%s4] sm:$0x1]
    %v222 = vperm.slane %v220, 0
    %v223 = vlaneseq
    %v224 = vshrl.u32 %v223, 7
    %226 = vset.pattern.permute.xlu0 %v224
    %227 = vperm.xlu0 %226, %v222
    %v228 = vpop.permute.xlu0 %227
    %v230 = vadd.f32 %v216, %v228
    %v231 = vadd.f32 %v219, %v228
    %234 = vset.pattern.permute.xlu0 0
    %235 = vperm.xlu0 %234, %v230
    %v236 = vpop.permute.xlu0 %235
    %237 = vset.pattern.permute.xlu0 0
    %238 = vperm.xlu0 %237, %v231
    %v239 = vpop.permute.xlu0 %238
    %v240 = vperm.slane %v236, %v166
    %v241 = vperm.slane %v239, %v166
    %vm242 = vcmask 1041409
    %v243 = vsel %vm242, %v241, %v240
    %vm245 = vcmask 25600
    %246 = vst.msk [vmem:[#allocation2] sm:$0x3] %vm245, %v243
    // Predicated region
    $region22: #{cnn_model_forward.1} parent=1 // pred_check
      _
    $region23: #{cnn_model_forward.1} parent=1 // pred_check_branch
      %248 = sbr.rel (0) target = $region25
    $region24: #{cnn_model_forward.1} parent=1 // pred_region
      %250 = vsyncadd [#allocation3], 0
      %s252 = sshll.u32 [#allocation2], 4
      %s253 = int_to_ptr.vmem [resolvable:$true] %s252
      %s254 = sshll.u32 %s5, 4
      %s255 = int_to_ptr.hbm [resolvable:$true] %s254
      %257 = dma.vmem_to_hbm [thread:$0]  %s253, 32, %s255, [#allocation3]
    $region25: #{cnn_model_forward.1} parent=1 // pred_fallthru
      _
    // Predicated region
    $region26: #{cnn_model_forward.1} parent=1 // pred_check
      _
    $region27: #{cnn_model_forward.1} parent=1 // pred_check_branch
      %259 = sbr.rel (0) target = $region29
    $region28: #{cnn_model_forward.1} parent=1 // pred_region
      %261 = dma.done [#allocation3], 32
    $region29: #{cnn_model_forward.1} parent=1 // pred_fallthru
      _
    %262 = vsyncpa [#allocation3], 1

</llo_original>
